<compile_context>
chip_gen: v7x
topology: tpu7x:2x2x1
jax: 0.10.0
libtpu: 0.0.40
codegen_flags: <defaults>
</compile_context>

<pallas_src>
import jax
import jax.numpy as jnp
from jax.experimental import pallas as pl
from jax.experimental.pallas import tpu as pltpu


def _logsigmoid(x):
    # logsigmoid(x) = -softplus(-x); stable form using only max/exp/abs/log.
    return -(jnp.maximum(-x, 0.0) + jnp.log(1.0 + jnp.exp(-jnp.abs(x))))


def _make_triplet_kernel(scale, tile_b, tiles_per_split):
    scale_f = float(scale)      # plain Python floats -> jaxpr literals,
    eps2 = 1e-8 * 1e-8          # NOT captured array constants.

    def kernel(iword_ref, oword_ref, onword_ref,    # scalar prefetch (SMEM)
               w_in_hbm, w_out_hbm,                 # pl.ANY -> stay in HBM
               out_ref,                             # (8, 128) per-split partial
               iv_buf, ov_buf, onv_buf,             # (2, tile_b, D) dbl buffers
               acc_ref,                             # (tile_b, 1) f32 accumulator
               sem):                                # DMA sems (2 slots, 3 streams)
        s = pl.program_id(0)                        # batch split ("parallel")
        t = pl.program_id(1)                        # batch tile  ("arbitrary")
        n_t = pl.num_programs(1)
        slot = jax.lax.rem(t, 2)

        def issue_tile(tile_idx, slot_idx):
            base = (s * tiles_per_split + tile_idx) * tile_b

            def body(r, carry):
                row = base + r
                pltpu.make_async_copy(
                    w_in_hbm.at[pl.ds(iword_ref[row], 1), :],
                    iv_buf.at[slot_idx, pl.ds(r, 1), :],
                    sem.at[slot_idx, 0]).start()
                pltpu.make_async_copy(
                    w_out_hbm.at[pl.ds(oword_ref[row], 1), :],
                    ov_buf.at[slot_idx, pl.ds(r, 1), :],
                    sem.at[slot_idx, 1]).start()
                pltpu.make_async_copy(
                    w_out_hbm.at[pl.ds(onword_ref[row], 1), :],
                    onv_buf.at[slot_idx, pl.ds(r, 1), :],
                    sem.at[slot_idx, 2]).start()
                return carry

            jax.lax.fori_loop(0, tile_b, body, 0)

        @pl.when(t == 0)
        def _init_and_prime():
            acc_ref[...] = jnp.zeros_like(acc_ref)
            issue_tile(0, 0)

        @pl.when(t + 1 < n_t)
        def _prefetch_next_tile():            # overlap next gather with this compute
            issue_tile(t + 1, 1 - slot)

        # Wait for this tile's 3 * tile_b row copies.  All copies on a stream
        # share one semaphore and have identical size, so one wait per issued
        # copy (in any order) is exact.
        def wait_body(r, carry):
            pltpu.make_async_copy(w_in_hbm.at[pl.ds(0, 1), :],
                                  iv_buf.at[slot, pl.ds(0, 1), :],
                                  sem.at[slot, 0]).wait()
            pltpu.make_async_copy(w_out_hbm.at[pl.ds(0, 1), :],
                                  ov_buf.at[slot, pl.ds(0, 1), :],
                                  sem.at[slot, 1]).wait()
            pltpu.make_async_copy(w_out_hbm.at[pl.ds(0, 1), :],
                                  onv_buf.at[slot, pl.ds(0, 1), :],
                                  sem.at[slot, 2]).wait()
            return carry

        jax.lax.fori_loop(0, tile_b, wait_body, 0)

        iv = iv_buf[slot].astype(jnp.float32)   # f32 compute (v5e: no bf16 VPU/EUP)
        ov = ov_buf[slot].astype(jnp.float32)
        onv = onv_buf[slot].astype(jnp.float32)

        # Five row-wise lane reductions (no sublane concatenate / relayout).
        dot_po = jnp.sum(iv * ov, axis=-1, keepdims=True)
        dot_pn = jnp.sum(iv * onv, axis=-1, keepdims=True)
        sq_i = jnp.sum(iv * iv, axis=-1, keepdims=True)
        sq_o = jnp.sum(ov * ov, axis=-1, keepdims=True)
        sq_n = jnp.sum(onv * onv, axis=-1, keepdims=True)

        # d(x, y) = 1 - (x.y) * rsqrt(max(|x|^2 |y|^2, eps^2))
        #         (== 1 - (x.y) / max(|x||y|, eps), the reference's clamp)
        d_pos = 1.0 - dot_po * jax.lax.rsqrt(jnp.maximum(sq_i * sq_o, eps2))
        d_neg = 1.0 - dot_pn * jax.lax.rsqrt(jnp.maximum(sq_i * sq_n, eps2))

        oloss = _logsigmoid(-scale_f * d_pos)   # logsigmoid(-scale * d_pos)
        nloss = _logsigmoid(scale_f * d_neg)    # logsigmoid(+scale * d_neg)

        # Per-row accumulate (1-vreg VPU add); defer the cross-sublane reduce.
        acc_ref[...] += oloss + nloss

        @pl.when(t == n_t - 1)
        def _finalize():
            partial = jnp.sum(acc_ref[...], keepdims=True)            # (1, 1)
            out_ref[...] = jnp.broadcast_to(partial, out_ref.shape)   # aligned tile

    return kernel


def _pick_tile_b(per_split, want):
    """Largest divisor of per_split that is <= want, preferring multiples of 8."""
    want = max(1, min(int(want), int(per_split)))
    fallback = 1
    for cand in range(want, 0, -1):
        if per_split % cand == 0:
            if cand % 8 == 0:
                return cand
            if fallback == 1:
                fallback = cand
    return fallback


def triplet_loss(iword, oword, onword, w_in, w_out, scale,
                 *, tile_b=256, num_splits=2):
    """TripletLoss forward: embedding gathers + cosine triplet loss in one kernel."""
    B = int(iword.shape[0])
    V, D = w_in.shape

    # Clamp gather indices: manual DMAs have no runtime bounds check.
    iword = jnp.clip(iword.astype(jnp.int32), 0, V - 1)
    oword = jnp.clip(oword.astype(jnp.int32), 0, V - 1)
    onword = jnp.clip(onword.astype(jnp.int32), 0, V - 1)

    # Split the batch across TensorCores (2 on v7x; harmless on v5e/v6e).
    nsplit = num_splits if (num_splits > 0 and B % num_splits == 0
                            and B >= 2 * num_splits) else 1
    per_split = B // nsplit
    tile_b = _pick_tile_b(per_split, tile_b)
    tiles_per_split = per_split // tile_b
    # TODO(synk): no masking path for ragged batches; _pick_tile_b falls back
    # to a divisor of the per-core batch instead of padding.

    kernel = _make_triplet_kernel(float(scale), tile_b, tiles_per_split)

    grid_spec = pltpu.PrefetchScalarGridSpec(
        num_scalar_prefetch=3,                     # iword, oword, onword -> SMEM
        grid=(nsplit, tiles_per_split),
        in_specs=[
            pl.BlockSpec(memory_space=pl.ANY),     # W_in  stays in HBM
            pl.BlockSpec(memory_space=pl.ANY),     # W_out stays in HBM
        ],
        # One lane/sublane-aligned (8, 128) partial-sum tile per split.
        out_specs=pl.BlockSpec((8, 128), lambda s, t, iw, ow, onw: (s, 0)),
        scratch_shapes=[
            pltpu.VMEM((2, tile_b, D), w_in.dtype),    # iv  double buffer
            pltpu.VMEM((2, tile_b, D), w_out.dtype),   # ov  double buffer
            pltpu.VMEM((2, tile_b, D), w_out.dtype),   # onv double buffer
            pltpu.VMEM((tile_b, 1), jnp.float32),      # per-row loss accumulator
            pltpu.SemaphoreType.DMA((2, 3)),           # (slot, stream) DMA sems
        ],
    )

    itemsize = jnp.dtype(w_in.dtype).itemsize
    cost = pl.CostEstimate(
        flops=int(B * (10 * D + 64)),
        transcendentals=int(6 * B),
        bytes_accessed=int(3 * B * D * itemsize + 3 * B * 4 + nsplit * 8 * 128 * 4),
    )

    partials = pl.pallas_call(
        kernel,
        grid_spec=grid_spec,
        out_shape=jax.ShapeDtypeStruct((nsplit * 8, 128), jnp.float32),
        compiler_params=pltpu.CompilerParams(
            dimension_semantics=("parallel", "arbitrary")),
        cost_estimate=cost,
    )(iword, oword, onword, w_in, w_out)

    # Each split's (8, 128) tile holds its partial sum broadcast everywhere.
    per_split_sums = partials[::8, 0]              # (nsplit,)
    return -jnp.sum(per_split_sums) / B


def _reference(iword, oword, onword, w_in, w_out, scale):
    iv = jnp.take(w_in, iword, axis=0).astype(jnp.float32)
    ov = jnp.take(w_out, oword, axis=0).astype(jnp.float32)
    onv = jnp.take(w_out, onword, axis=0).astype(jnp.float32)
    eps = 1e-8

    def cos_dist(a, b):
        num = jnp.sum(a * b, axis=-1)
        den = jnp.maximum(jnp.linalg.norm(a, axis=-1) * jnp.linalg.norm(b, axis=-1), eps)
        return 1.0 - num / den

    logsig = jax.nn.log_sigmoid
    oloss = logsig(-scale * cos_dist(iv, ov))
    nloss = logsig(-scale * (-cos_dist(iv, onv)))
    return -jnp.mean(oloss + nloss)


if __name__ == "__main__":
    # Deterministic synthetic embedding "module": word2vec-style in/out tables.
    V, D = 64, 128              # vocab, embedding dim
    B = 64                      # batch of (iword, oword, onword) triplets
    scale = 1.0                 # embedding.scale

    key = jax.random.PRNGKey(0)
    k_wi, k_wo, k_i, k_o, k_on = jax.random.split(key, 5)
    w_in = jax.random.normal(k_wi, (V, D), dtype=jnp.float32) * 0.1
    w_out = jax.random.normal(k_wo, (V, D), dtype=jnp.float32) * 0.1

    iword = jax.random.randint(k_i, (B,), 0, V)
    oword = jax.random.randint(k_o, (B,), 0, V)
    onword = jax.random.randint(k_on, (B,), 0, V)

    ref = _reference(iword, oword, onword, w_in, w_out, scale)

    # Multi-tile path: exercises double-buffered DMA gather + 2-way split.
    loss_tiled = triplet_loss(iword, oword, onword, w_in, w_out, scale,
                              tile_b=16, num_splits=2)
    jax.block_until_ready(loss_tiled)
    assert jnp.allclose(loss_tiled, ref, atol=1e-5, rtol=1e-5), (loss_tiled, ref)

    # Default config: large tile -> one grid step per split.
    loss_default = triplet_loss(iword, oword, onword, w_in, w_out, scale)
    jax.block_until_ready(loss_default)
    assert jnp.allclose(loss_default, ref, atol=1e-5, rtol=1e-5), (loss_default, ref)

    # bf16 tables: gather stays bf16 (half the HBM bytes), compute in f32.
    w_in_bf = w_in.astype(jnp.bfloat16)
    w_out_bf = w_out.astype(jnp.bfloat16)
    ref_bf = _reference(iword, oword, onword, w_in_bf, w_out_bf, scale)
    loss_bf = triplet_loss(iword, oword, onword, w_in_bf, w_out_bf, scale,
                           tile_b=16, num_splits=2)
    jax.block_until_ready(loss_bf)
    assert jnp.allclose(loss_bf, ref_bf, atol=1e-4, rtol=1e-4), (loss_bf, ref_bf)

    print("KERNEL_OK")
</pallas_src>

<mosaic_0001>
module attributes {stable_mosaic.version = 11 : i64} {
  func.func @kernel(%arg0: i32, %arg1: i32, %arg2: memref<64xi32, #tpu.memory_space<smem>>, %arg3: memref<64xi32, #tpu.memory_space<smem>>, %arg4: memref<64xi32, #tpu.memory_space<smem>>, %arg5: memref<64x128xf32, #tpu.memory_space<any>>, %arg6: memref<64x128xf32, #tpu.memory_space<any>>, %arg7: memref<8x128xf32, #tpu.memory_space<vmem>>, %arg8: memref<2x16x128xf32, #tpu.memory_space<vmem>>, %arg9: memref<2x16x128xf32, #tpu.memory_space<vmem>>, %arg10: memref<2x16x128xf32, #tpu.memory_space<vmem>>, %arg11: memref<16x1xf32, #tpu.memory_space<vmem>>, %arg12: memref<2x3x!tpu.dma_semaphore, #tpu.memory_space<semaphore_mem>>) attributes {dimension_semantics = [#tpu.dimension_semantics<parallel>, #tpu.dimension_semantics<arbitrary>], iteration_bounds = array<i64: 2, 2>, scalar_prefetch = 3 : i64, scratch_operands = 5 : i64, tpu.core_type = #tpu.core_type<tc>, window_params = [{}, {}, {transform_indices = @transform_2, window_bounds = array<i64: 8, 128>}]} {
    %c2_i32 = arith.constant 2 : i32
    %0 = arith.remsi %arg1, %c2_i32 : i32
    %c0_i32 = arith.constant 0 : i32
    %1 = arith.cmpi eq, %arg1, %c0_i32 : i32
    %2 = arith.extui %1 : i1 to i32
    %c0_i32_0 = arith.constant 0 : i32
    %3 = arith.cmpi ne, %2, %c0_i32_0 : i32
    scf.if %3 {
      %cst_36 = arith.constant 0.000000e+00 : f32
      %86 = vector.broadcast %cst_36 : f32 to vector<16x1xf32>
      %c0_37 = arith.constant 0 : index
      %c0_38 = arith.constant 0 : index
      %87 = vector.load %arg11[%c0_37, %c0_38] : memref<16x1xf32, #tpu.memory_space<vmem>>, vector<16x1xf32>
      tpu.vector_store %arg11[%c0_37, %c0_38], %86 {strides = array<i32>} : memref<16x1xf32, #tpu.memory_space<vmem>>, vector<16x1xf32>,
      %c2_i32_39 = arith.constant 2 : i32
      %88 = arith.muli %arg0, %c2_i32_39 : i32
      %c0_i32_40 = arith.constant 0 : i32
      %89 = arith.addi %88, %c0_i32_40 : i32
      %c16_i32_41 = arith.constant 16 : i32
      %90 = arith.muli %89, %c16_i32_41 : i32
      %c0_i32_42 = arith.constant 0 : i32
      %c16_i32_43 = arith.constant 16 : i32
      %91 = arith.addi %c0_i32_42, %c16_i32_43 : i32
      %c1_i32_44 = arith.constant 1 : i32
      scf.for %arg13 = %c0_i32_42 to %91 step %c1_i32_44  : i32 {
        %92 = arith.addi %90, %arg13 : i32
        %93 = arith.index_cast %92 : i32 to index
        %94 = memref.load %arg2[%93] : memref<64xi32, #tpu.memory_space<smem>>
        %c0_i32_46 = arith.constant 0 : i32
        %c0_i32_47 = arith.constant 0 : i32
        %c0_i32_48 = arith.constant 0 : i32
        %c0_i32_49 = arith.constant 0 : i32
        %95 = tpu.memref_slice %arg5[%94, %c0_i32_49] : memref<64x128xf32, #tpu.memory_space<any>> -> memref<1x128xf32, #tpu.memory_space<any>>
        %c0_i32_50 = arith.constant 0 : i32
        %96 = tpu.memref_slice %arg8[%c0_i32_46, %arg13, %c0_i32_50] : memref<2x16x128xf32, #tpu.memory_space<vmem>> -> memref<1x1x128xf32, #tpu.memory_space<vmem>>
        %97 = tpu.memref_squeeze %96 : memref<1x1x128xf32, #tpu.memory_space<vmem>> -> memref<1x128xf32, #tpu.memory_space<vmem>>
        %98 = tpu.memref_slice %arg12[%c0_i32_47, %c0_i32_48] : memref<2x3x!tpu.dma_semaphore, #tpu.memory_space<semaphore_mem>> -> memref<1x1x!tpu.dma_semaphore, #tpu.memory_space<semaphore_mem>>
        %99 = tpu.memref_squeeze %98 : memref<1x1x!tpu.dma_semaphore, #tpu.memory_space<semaphore_mem>> -> memref<!tpu.dma_semaphore, #tpu.memory_space<semaphore_mem>>
        tpu.enqueue_dma source(%95 : memref<1x128xf32, #tpu.memory_space<any>>) target(%97 : memref<1x128xf32, #tpu.memory_space<vmem>>) target_semaphore(%99 : memref<!tpu.dma_semaphore, #tpu.memory_space<semaphore_mem>>)
        %100 = arith.index_cast %92 : i32 to index
        %101 = memref.load %arg3[%100] : memref<64xi32, #tpu.memory_space<smem>>
        %c0_i32_51 = arith.constant 0 : i32
        %c0_i32_52 = arith.constant 0 : i32
        %c1_i32_53 = arith.constant 1 : i32
        %c0_i32_54 = arith.constant 0 : i32
        %102 = tpu.memref_slice %arg6[%101, %c0_i32_54] : memref<64x128xf32, #tpu.memory_space<any>> -> memref<1x128xf32, #tpu.memory_space<any>>
        %c0_i32_55 = arith.constant 0 : i32
        %103 = tpu.memref_slice %arg9[%c0_i32_51, %arg13, %c0_i32_55] : memref<2x16x128xf32, #tpu.memory_space<vmem>> -> memref<1x1x128xf32, #tpu.memory_space<vmem>>
        %104 = tpu.memref_squeeze %103 : memref<1x1x128xf32, #tpu.memory_space<vmem>> -> memref<1x128xf32, #tpu.memory_space<vmem>>
        %105 = tpu.memref_slice %arg12[%c0_i32_52, %c1_i32_53] : memref<2x3x!tpu.dma_semaphore, #tpu.memory_space<semaphore_mem>> -> memref<1x1x!tpu.dma_semaphore, #tpu.memory_space<semaphore_mem>>
        %106 = tpu.memref_squeeze %105 : memref<1x1x!tpu.dma_semaphore, #tpu.memory_space<semaphore_mem>> -> memref<!tpu.dma_semaphore, #tpu.memory_space<semaphore_mem>>
        tpu.enqueue_dma source(%102 : memref<1x128xf32, #tpu.memory_space<any>>) target(%104 : memref<1x128xf32, #tpu.memory_space<vmem>>) target_semaphore(%106 : memref<!tpu.dma_semaphore, #tpu.memory_space<semaphore_mem>>)
        %107 = arith.index_cast %92 : i32 to index
        %108 = memref.load %arg4[%107] : memref<64xi32, #tpu.memory_space<smem>>
        %c0_i32_56 = arith.constant 0 : i32
        %c0_i32_57 = arith.constant 0 : i32
        %c2_i32_58 = arith.constant 2 : i32
        %c0_i32_59 = arith.constant 0 : i32
        %109 = tpu.memref_slice %arg6[%108, %c0_i32_59] : memref<64x128xf32, #tpu.memory_space<any>> -> memref<1x128xf32, #tpu.memory_space<any>>
        %c0_i32_60 = arith.constant 0 : i32
        %110 = tpu.memref_slice %arg10[%c0_i32_56, %arg13, %c0_i32_60] : memref<2x16x128xf32, #tpu.memory_space<vmem>> -> memref<1x1x128xf32, #tpu.memory_space<vmem>>
        %111 = tpu.memref_squeeze %110 : memref<1x1x128xf32, #tpu.memory_space<vmem>> -> memref<1x128xf32, #tpu.memory_space<vmem>>
        %112 = tpu.memref_slice %arg12[%c0_i32_57, %c2_i32_58] : memref<2x3x!tpu.dma_semaphore, #tpu.memory_space<semaphore_mem>> -> memref<1x1x!tpu.dma_semaphore, #tpu.memory_space<semaphore_mem>>
        %113 = tpu.memref_squeeze %112 : memref<1x1x!tpu.dma_semaphore, #tpu.memory_space<semaphore_mem>> -> memref<!tpu.dma_semaphore, #tpu.memory_space<semaphore_mem>>
        tpu.enqueue_dma source(%109 : memref<1x128xf32, #tpu.memory_space<any>>) target(%111 : memref<1x128xf32, #tpu.memory_space<vmem>>) target_semaphore(%113 : memref<!tpu.dma_semaphore, #tpu.memory_space<semaphore_mem>>)
      }
      %c16_i32_45 = arith.constant 16 : i32
    } else {
    }
    %c1_i32 = arith.constant 1 : i32
    %4 = arith.addi %arg1, %c1_i32 : i32
    %c2_i32_1 = arith.constant 2 : i32
    %5 = arith.cmpi slt, %4, %c2_i32_1 : i32
    %6 = arith.extui %5 : i1 to i32
    %c0_i32_2 = arith.constant 0 : i32
    %7 = arith.cmpi ne, %6, %c0_i32_2 : i32
    scf.if %7 {
      %c1_i32_36 = arith.constant 1 : i32
      %86 = arith.addi %arg1, %c1_i32_36 : i32
      %c1_i32_37 = arith.constant 1 : i32
      %87 = arith.subi %c1_i32_37, %0 : i32
      %c2_i32_38 = arith.constant 2 : i32
      %88 = arith.muli %arg0, %c2_i32_38 : i32
      %89 = arith.addi %88, %86 : i32
      %c16_i32_39 = arith.constant 16 : i32
      %90 = arith.muli %89, %c16_i32_39 : i32
      %c0_i32_40 = arith.constant 0 : i32
      %c16_i32_41 = arith.constant 16 : i32
      %91 = arith.addi %c0_i32_40, %c16_i32_41 : i32
      %c1_i32_42 = arith.constant 1 : i32
      scf.for %arg13 = %c0_i32_40 to %91 step %c1_i32_42  : i32 {
        %92 = arith.addi %90, %arg13 : i32
        %93 = arith.index_cast %92 : i32 to index
        %94 = memref.load %arg2[%93] : memref<64xi32, #tpu.memory_space<smem>>
        %c0_i32_44 = arith.constant 0 : i32
        %c0_i32_45 = arith.constant 0 : i32
        %95 = tpu.memref_slice %arg5[%94, %c0_i32_45] : memref<64x128xf32, #tpu.memory_space<any>> -> memref<1x128xf32, #tpu.memory_space<any>>
        %c0_i32_46 = arith.constant 0 : i32
        %96 = tpu.memref_slice %arg8[%87, %arg13, %c0_i32_46] : memref<2x16x128xf32, #tpu.memory_space<vmem>> -> memref<1x1x128xf32, #tpu.memory_space<vmem>>
        %97 = tpu.memref_squeeze %96 : memref<1x1x128xf32, #tpu.memory_space<vmem>> -> memref<1x128xf32, #tpu.memory_space<vmem>>
        %98 = tpu.memref_slice %arg12[%87, %c0_i32_44] : memref<2x3x!tpu.dma_semaphore, #tpu.memory_space<semaphore_mem>> -> memref<1x1x!tpu.dma_semaphore, #tpu.memory_space<semaphore_mem>>
        %99 = tpu.memref_squeeze %98 : memref<1x1x!tpu.dma_semaphore, #tpu.memory_space<semaphore_mem>> -> memref<!tpu.dma_semaphore, #tpu.memory_space<semaphore_mem>>
        tpu.enqueue_dma source(%95 : memref<1x128xf32, #tpu.memory_space<any>>) target(%97 : memref<1x128xf32, #tpu.memory_space<vmem>>) target_semaphore(%99 : memref<!tpu.dma_semaphore, #tpu.memory_space<semaphore_mem>>)
        %100 = arith.index_cast %92 : i32 to index
        %101 = memref.load %arg3[%100] : memref<64xi32, #tpu.memory_space<smem>>
        %c1_i32_47 = arith.constant 1 : i32
        %c0_i32_48 = arith.constant 0 : i32
        %102 = tpu.memref_slice %arg6[%101, %c0_i32_48] : memref<64x128xf32, #tpu.memory_space<any>> -> memref<1x128xf32, #tpu.memory_space<any>>
        %c0_i32_49 = arith.constant 0 : i32
        %103 = tpu.memref_slice %arg9[%87, %arg13, %c0_i32_49] : memref<2x16x128xf32, #tpu.memory_space<vmem>> -> memref<1x1x128xf32, #tpu.memory_space<vmem>>
        %104 = tpu.memref_squeeze %103 : memref<1x1x128xf32, #tpu.memory_space<vmem>> -> memref<1x128xf32, #tpu.memory_space<vmem>>
        %105 = tpu.memref_slice %arg12[%87, %c1_i32_47] : memref<2x3x!tpu.dma_semaphore, #tpu.memory_space<semaphore_mem>> -> memref<1x1x!tpu.dma_semaphore, #tpu.memory_space<semaphore_mem>>
        %106 = tpu.memref_squeeze %105 : memref<1x1x!tpu.dma_semaphore, #tpu.memory_space<semaphore_mem>> -> memref<!tpu.dma_semaphore, #tpu.memory_space<semaphore_mem>>
        tpu.enqueue_dma source(%102 : memref<1x128xf32, #tpu.memory_space<any>>) target(%104 : memref<1x128xf32, #tpu.memory_space<vmem>>) target_semaphore(%106 : memref<!tpu.dma_semaphore, #tpu.memory_space<semaphore_mem>>)
        %107 = arith.index_cast %92 : i32 to index
        %108 = memref.load %arg4[%107] : memref<64xi32, #tpu.memory_space<smem>>
        %c2_i32_50 = arith.constant 2 : i32
        %c0_i32_51 = arith.constant 0 : i32
        %109 = tpu.memref_slice %arg6[%108, %c0_i32_51] : memref<64x128xf32, #tpu.memory_space<any>> -> memref<1x128xf32, #tpu.memory_space<any>>
        %c0_i32_52 = arith.constant 0 : i32
        %110 = tpu.memref_slice %arg10[%87, %arg13, %c0_i32_52] : memref<2x16x128xf32, #tpu.memory_space<vmem>> -> memref<1x1x128xf32, #tpu.memory_space<vmem>>
        %111 = tpu.memref_squeeze %110 : memref<1x1x128xf32, #tpu.memory_space<vmem>> -> memref<1x128xf32, #tpu.memory_space<vmem>>
        %112 = tpu.memref_slice %arg12[%87, %c2_i32_50] : memref<2x3x!tpu.dma_semaphore, #tpu.memory_space<semaphore_mem>> -> memref<1x1x!tpu.dma_semaphore, #tpu.memory_space<semaphore_mem>>
        %113 = tpu.memref_squeeze %112 : memref<1x1x!tpu.dma_semaphore, #tpu.memory_space<semaphore_mem>> -> memref<!tpu.dma_semaphore, #tpu.memory_space<semaphore_mem>>
        tpu.enqueue_dma source(%109 : memref<1x128xf32, #tpu.memory_space<any>>) target(%111 : memref<1x128xf32, #tpu.memory_space<vmem>>) target_semaphore(%113 : memref<!tpu.dma_semaphore, #tpu.memory_space<semaphore_mem>>)
      }
      %c16_i32_43 = arith.constant 16 : i32
    } else {
    }
    %c0_i32_3 = arith.constant 0 : i32
    %c16_i32 = arith.constant 16 : i32
    %8 = arith.addi %c0_i32_3, %c16_i32 : i32
    %c1_i32_4 = arith.constant 1 : i32
    scf.for %arg13 = %c0_i32_3 to %8 step %c1_i32_4  : i32 {
      %c0_i32_36 = arith.constant 0 : i32
      %c0_i32_37 = arith.constant 0 : i32
      %c0_i32_38 = arith.constant 0 : i32
      %86 = tpu.memref_slice %arg5[%c0_i32_37, %c0_i32_38] : memref<64x128xf32, #tpu.memory_space<any>> -> memref<1x128xf32, #tpu.memory_space<any>>
      %c0_i32_39 = arith.constant 0 : i32
      %c0_i32_40 = arith.constant 0 : i32
      %87 = tpu.memref_slice %arg8[%0, %c0_i32_39, %c0_i32_40] : memref<2x16x128xf32, #tpu.memory_space<vmem>> -> memref<1x1x128xf32, #tpu.memory_space<vmem>>
      %88 = tpu.memref_squeeze %87 : memref<1x1x128xf32, #tpu.memory_space<vmem>> -> memref<1x128xf32, #tpu.memory_space<vmem>>
      %89 = tpu.memref_slice %arg12[%0, %c0_i32_36] : memref<2x3x!tpu.dma_semaphore, #tpu.memory_space<semaphore_mem>> -> memref<1x1x!tpu.dma_semaphore, #tpu.memory_space<semaphore_mem>>
      %90 = tpu.memref_squeeze %89 : memref<1x1x!tpu.dma_semaphore, #tpu.memory_space<semaphore_mem>> -> memref<!tpu.dma_semaphore, #tpu.memory_space<semaphore_mem>>
      tpu.wait_dma2 semaphore(%90 : memref<!tpu.dma_semaphore, #tpu.memory_space<semaphore_mem>>) src(%86 : memref<1x128xf32, #tpu.memory_space<any>>) dst(%88 : memref<1x128xf32, #tpu.memory_space<vmem>>)
      %c1_i32_41 = arith.constant 1 : i32
      %c0_i32_42 = arith.constant 0 : i32
      %c0_i32_43 = arith.constant 0 : i32
      %91 = tpu.memref_slice %arg6[%c0_i32_42, %c0_i32_43] : memref<64x128xf32, #tpu.memory_space<any>> -> memref<1x128xf32, #tpu.memory_space<any>>
      %c0_i32_44 = arith.constant 0 : i32
      %c0_i32_45 = arith.constant 0 : i32
      %92 = tpu.memref_slice %arg9[%0, %c0_i32_44, %c0_i32_45] : memref<2x16x128xf32, #tpu.memory_space<vmem>> -> memref<1x1x128xf32, #tpu.memory_space<vmem>>
      %93 = tpu.memref_squeeze %92 : memref<1x1x128xf32, #tpu.memory_space<vmem>> -> memref<1x128xf32, #tpu.memory_space<vmem>>
      %94 = tpu.memref_slice %arg12[%0, %c1_i32_41] : memref<2x3x!tpu.dma_semaphore, #tpu.memory_space<semaphore_mem>> -> memref<1x1x!tpu.dma_semaphore, #tpu.memory_space<semaphore_mem>>
      %95 = tpu.memref_squeeze %94 : memref<1x1x!tpu.dma_semaphore, #tpu.memory_space<semaphore_mem>> -> memref<!tpu.dma_semaphore, #tpu.memory_space<semaphore_mem>>
      tpu.wait_dma2 semaphore(%95 : memref<!tpu.dma_semaphore, #tpu.memory_space<semaphore_mem>>) src(%91 : memref<1x128xf32, #tpu.memory_space<any>>) dst(%93 : memref<1x128xf32, #tpu.memory_space<vmem>>)
      %c2_i32_46 = arith.constant 2 : i32
      %c0_i32_47 = arith.constant 0 : i32
      %c0_i32_48 = arith.constant 0 : i32
      %96 = tpu.memref_slice %arg6[%c0_i32_47, %c0_i32_48] : memref<64x128xf32, #tpu.memory_space<any>> -> memref<1x128xf32, #tpu.memory_space<any>>
      %c0_i32_49 = arith.constant 0 : i32
      %c0_i32_50 = arith.constant 0 : i32
      %97 = tpu.memref_slice %arg10[%0, %c0_i32_49, %c0_i32_50] : memref<2x16x128xf32, #tpu.memory_space<vmem>> -> memref<1x1x128xf32, #tpu.memory_space<vmem>>
      %98 = tpu.memref_squeeze %97 : memref<1x1x128xf32, #tpu.memory_space<vmem>> -> memref<1x128xf32, #tpu.memory_space<vmem>>
      %99 = tpu.memref_slice %arg12[%0, %c2_i32_46] : memref<2x3x!tpu.dma_semaphore, #tpu.memory_space<semaphore_mem>> -> memref<1x1x!tpu.dma_semaphore, #tpu.memory_space<semaphore_mem>>
      %100 = tpu.memref_squeeze %99 : memref<1x1x!tpu.dma_semaphore, #tpu.memory_space<semaphore_mem>> -> memref<!tpu.dma_semaphore, #tpu.memory_space<semaphore_mem>>
      tpu.wait_dma2 semaphore(%100 : memref<!tpu.dma_semaphore, #tpu.memory_space<semaphore_mem>>) src(%96 : memref<1x128xf32, #tpu.memory_space<any>>) dst(%98 : memref<1x128xf32, #tpu.memory_space<vmem>>)
    }
    %9 = arith.index_cast %0 : i32 to index
    %c0 = arith.constant 0 : index
    %c0_5 = arith.constant 0 : index
    %10 = vector.load %arg8[%9, %c0, %c0_5] : memref<2x16x128xf32, #tpu.memory_space<vmem>>, vector<1x16x128xf32>
    %11 = vector.shape_cast %10 : vector<1x16x128xf32> to vector<16x128xf32>
    %12 = arith.index_cast %0 : i32 to index
    %c0_6 = arith.constant 0 : index
    %c0_7 = arith.constant 0 : index
    %13 = vector.load %arg9[%12, %c0_6, %c0_7] : memref<2x16x128xf32, #tpu.memory_space<vmem>>, vector<1x16x128xf32>
    %14 = vector.shape_cast %13 : vector<1x16x128xf32> to vector<16x128xf32>
    %15 = arith.index_cast %0 : i32 to index
    %c0_8 = arith.constant 0 : index
    %c0_9 = arith.constant 0 : index
    %16 = vector.load %arg10[%15, %c0_8, %c0_9] : memref<2x16x128xf32, #tpu.memory_space<vmem>>, vector<1x16x128xf32>
    %17 = vector.shape_cast %16 : vector<1x16x128xf32> to vector<16x128xf32>
    %18 = arith.mulf %11, %14 : vector<16x128xf32>
    %cst = arith.constant dense<0.000000e+00> : vector<16xf32>
    %19 = vector.multi_reduction <add>, %18, %cst [1] : vector<16x128xf32> to vector<16xf32>
    %20 = vector.shape_cast %19 : vector<16xf32> to vector<16x1xf32>
    %21 = arith.mulf %11, %17 : vector<16x128xf32>
    %cst_10 = arith.constant dense<0.000000e+00> : vector<16xf32>
    %22 = vector.multi_reduction <add>, %21, %cst_10 [1] : vector<16x128xf32> to vector<16xf32>
    %23 = vector.shape_cast %22 : vector<16xf32> to vector<16x1xf32>
    %24 = arith.mulf %11, %11 : vector<16x128xf32>
    %cst_11 = arith.constant dense<0.000000e+00> : vector<16xf32>
    %25 = vector.multi_reduction <add>, %24, %cst_11 [1] : vector<16x128xf32> to vector<16xf32>
    %26 = vector.shape_cast %25 : vector<16xf32> to vector<16x1xf32>
    %27 = arith.mulf %14, %14 : vector<16x128xf32>
    %cst_12 = arith.constant dense<0.000000e+00> : vector<16xf32>
    %28 = vector.multi_reduction <add>, %27, %cst_12 [1] : vector<16x128xf32> to vector<16xf32>
    %29 = vector.shape_cast %28 : vector<16xf32> to vector<16x1xf32>
    %30 = arith.mulf %17, %17 : vector<16x128xf32>
    %cst_13 = arith.constant dense<0.000000e+00> : vector<16xf32>
    %31 = vector.multi_reduction <add>, %30, %cst_13 [1] : vector<16x128xf32> to vector<16xf32>
    %32 = vector.shape_cast %31 : vector<16xf32> to vector<16x1xf32>
    %33 = arith.mulf %26, %29 : vector<16x1xf32>
    %cst_14 = arith.constant 1.000000e-16 : f32
    %34 = vector.broadcast %cst_14 : f32 to vector<16x1xf32>
    %35 = arith.maximumf %33, %34 : vector<16x1xf32>
    %36 = math.rsqrt %35 : vector<16x1xf32>
    %37 = arith.mulf %20, %36 : vector<16x1xf32>
    %cst_15 = arith.constant 1.000000e+00 : f32
    %38 = vector.broadcast %cst_15 : f32 to vector<16x1xf32>
    %39 = arith.subf %38, %37 : vector<16x1xf32>
    %40 = arith.mulf %26, %32 : vector<16x1xf32>
    %cst_16 = arith.constant 1.000000e-16 : f32
    %41 = vector.broadcast %cst_16 : f32 to vector<16x1xf32>
    %42 = arith.maximumf %40, %41 : vector<16x1xf32>
    %43 = math.rsqrt %42 : vector<16x1xf32>
    %44 = arith.mulf %23, %43 : vector<16x1xf32>
    %cst_17 = arith.constant 1.000000e+00 : f32
    %45 = vector.broadcast %cst_17 : f32 to vector<16x1xf32>
    %46 = arith.subf %45, %44 : vector<16x1xf32>
    %cst_18 = arith.constant -1.000000e+00 : f32
    %47 = vector.broadcast %cst_18 : f32 to vector<16x1xf32>
    %48 = arith.mulf %47, %39 : vector<16x1xf32>
    %cst_19 = arith.constant 0.000000e+00 : f32
    %49 = vector.broadcast %cst_19 : f32 to vector<16x1xf32>
    %50 = arith.subf %49, %48 : vector<16x1xf32>
    %cst_20 = arith.constant 0.000000e+00 : f32
    %51 = vector.broadcast %cst_20 : f32 to vector<16x1xf32>
    %52 = arith.maximumf %50, %51 : vector<16x1xf32>
    %53 = math.absf %48 : vector<16x1xf32>
    %cst_21 = arith.constant 0.000000e+00 : f32
    %54 = vector.broadcast %cst_21 : f32 to vector<16x1xf32>
    %55 = arith.subf %54, %53 : vector<16x1xf32>
    %56 = math.exp %55 : vector<16x1xf32>
    %cst_22 = arith.constant 1.000000e+00 : f32
    %57 = vector.broadcast %cst_22 : f32 to vector<16x1xf32>
    %58 = arith.addf %57, %56 : vector<16x1xf32>
    %59 = math.log %58 : vector<16x1xf32>
    %60 = arith.addf %52, %59 : vector<16x1xf32>
    %cst_23 = arith.constant 0.000000e+00 : f32
    %61 = vector.broadcast %cst_23 : f32 to vector<16x1xf32>
    %62 = arith.subf %61, %60 : vector<16x1xf32>
    %cst_24 = arith.constant 1.000000e+00 : f32
    %63 = vector.broadcast %cst_24 : f32 to vector<16x1xf32>
    %64 = arith.mulf %63, %46 : vector<16x1xf32>
    %cst_25 = arith.constant 0.000000e+00 : f32
    %65 = vector.broadcast %cst_25 : f32 to vector<16x1xf32>
    %66 = arith.subf %65, %64 : vector<16x1xf32>
    %cst_26 = arith.constant 0.000000e+00 : f32
    %67 = vector.broadcast %cst_26 : f32 to vector<16x1xf32>
    %68 = arith.maximumf %66, %67 : vector<16x1xf32>
    %69 = math.absf %64 : vector<16x1xf32>
    %cst_27 = arith.constant 0.000000e+00 : f32
    %70 = vector.broadcast %cst_27 : f32 to vector<16x1xf32>
    %71 = arith.subf %70, %69 : vector<16x1xf32>
    %72 = math.exp %71 : vector<16x1xf32>
    %cst_28 = arith.constant 1.000000e+00 : f32
    %73 = vector.broadcast %cst_28 : f32 to vector<16x1xf32>
    %74 = arith.addf %73, %72 : vector<16x1xf32>
    %75 = math.log %74 : vector<16x1xf32>
    %76 = arith.addf %68, %75 : vector<16x1xf32>
    %cst_29 = arith.constant 0.000000e+00 : f32
    %77 = vector.broadcast %cst_29 : f32 to vector<16x1xf32>
    %78 = arith.subf %77, %76 : vector<16x1xf32>
    %c0_30 = arith.constant 0 : index
    %c0_31 = arith.constant 0 : index
    %79 = vector.load %arg11[%c0_30, %c0_31] : memref<16x1xf32, #tpu.memory_space<vmem>>, vector<16x1xf32>
    %80 = arith.addf %62, %78 : vector<16x1xf32>
    %81 = arith.addf %79, %80 : vector<16x1xf32>
    %c0_32 = arith.constant 0 : index
    %c0_33 = arith.constant 0 : index
    %82 = vector.load %arg11[%c0_32, %c0_33] : memref<16x1xf32, #tpu.memory_space<vmem>>, vector<16x1xf32>
    tpu.vector_store %arg11[%c0_32, %c0_33], %81 {strides = array<i32>} : memref<16x1xf32, #tpu.memory_space<vmem>>, vector<16x1xf32>,
    %c1_i32_34 = arith.constant 1 : i32
    %83 = arith.cmpi eq, %arg1, %c1_i32_34 : i32
    %84 = arith.extui %83 : i1 to i32
    %c0_i32_35 = arith.constant 0 : i32
    %85 = arith.cmpi ne, %84, %c0_i32_35 : i32
    scf.if %85 {
      %c0_36 = arith.constant 0 : index
      %c0_37 = arith.constant 0 : index
      %86 = vector.load %arg11[%c0_36, %c0_37] : memref<16x1xf32, #tpu.memory_space<vmem>>, vector<16x1xf32>
      %87 = vector.shape_cast %86 : vector<16x1xf32> to vector<1x16x1xf32>
      %cst_38 = arith.constant dense<0.000000e+00> : vector<1xf32>
      %88 = vector.multi_reduction <add>, %87, %cst_38 [1, 2] : vector<1x16x1xf32> to vector<1xf32>
      %89 = vector.shape_cast %88 : vector<1xf32> to vector<1x1x1xf32>
      %90 = vector.extract %89[0, 0, 0] : f32 from vector<1x1x1xf32>
      %91 = vector.broadcast %90 : f32 to vector<1x1xf32>
      %92 = vector.shape_cast %91 : vector<1x1xf32> to vector<1x1xf32>
      %93 = vector.broadcast %92 : vector<1x1xf32> to vector<8x128xf32>
      %c0_39 = arith.constant 0 : index
      %c0_40 = arith.constant 0 : index
      %94 = vector.load %arg7[%c0_39, %c0_40] : memref<8x128xf32, #tpu.memory_space<vmem>>, vector<8x128xf32>
      tpu.vector_store %arg7[%c0_39, %c0_40], %93 {strides = array<i32>} : memref<8x128xf32, #tpu.memory_space<vmem>>, vector<8x128xf32>,
    } else {
    }
    return
  }
  func.func @transform_2(%arg0: i32, %arg1: i32, %arg2: memref<64xi32, #tpu.memory_space<smem>>, %arg3: memref<64xi32, #tpu.memory_space<smem>>, %arg4: memref<64xi32, #tpu.memory_space<smem>>) -> (i32, i32) {
    %c0_i32 = arith.constant 0 : i32
    %c0_i32_0 = arith.constant 0 : i32
    return %arg0, %c0_i32 : i32, i32
  }
}

</mosaic_0001>

<llo_original>
// kernel: tpu_custom_call.1
$region0: #{tpu_custom_call.1}
  #allocation0 [shape = 'u32[]', space=smem, size = 0x4, offset = 0x4, fixed_abs, tag = 'smem constant byte address 0x4 - core index']
  #allocation1 [shape = 'u32[144,128]{1,0:T(1,128)}', space=vmem, size = 0x12000, scoped, tag = 'internal scratch']
  #allocation2 [shape = 'f32[2,16,128]{2,1,0:T(8,128)}', space=vmem, size = 0x4000, scoped, tag = 'scratch operand']
  #allocation3 [shape = 'f32[2,16,128]{2,1,0:T(8,128)}', space=vmem, size = 0x4000, scoped, tag = 'scratch operand']
  #allocation4 [shape = 'f32[2,16,128]{2,1,0:T(8,128)}', space=vmem, size = 0x4000, scoped, tag = 'scratch operand']
  #allocation5 [shape = 'f32[16,1]{1,0:T(8,128)}', space=vmem, size = 0x2000, scoped, tag = 'scratch operand']
  #allocation6 [shape = 's32[6]{0}', space=sflag, size = 0x18, scoped, tag = 'scratch operand']
  #allocation7 [shape = 's32[1]{0}', space=sflag, size = 0x4, scoped, tag = 'scoped memory for tpu_custom_call.1']
  #allocation8 [shape = 'u8[512]{0}', space=smem, size = 0x200, scoped, tag = 'prefetched SMEM operand 0']
  #allocation9 [shape = 'u8[512]{0}', space=smem, size = 0x200, scoped, tag = 'prefetched SMEM operand 1']
  #allocation10 [shape = 'u8[512]{0}', space=smem, size = 0x200, scoped, tag = 'prefetched SMEM operand 2']
  #allocation13 [shape = 's32[]', space=sflag, size = 0x4, offset = 0, fixed_abs, tag = 'sflag constant byte address 0x0 - dummy sync flag']
  #allocation14 [shape = 's32[]', space=sflag, size = 0x4, offset = 0, fixed_abs, tag = 'sflag constant byte address 0x0 - dummy sync flag']
  #allocation15 [shape = 'u32[]', space=smem, size = 0x4, offset = 0x44, fixed_abs, tag = 'smem constant byte address 0x44 - assertion arg 0']
  #allocation16 [shape = 'u32[]', space=smem, size = 0x4, offset = 0x48, fixed_abs, tag = 'smem constant byte address 0x48 - assertion arg 1']
  #allocation17 [shape = 's32[]', space=sflag, size = 0x4, offset = 0, fixed_abs, tag = 'sflag constant byte address 0x0 - dummy sync flag']
  #allocation18 [shape = 's32[]', space=sflag, size = 0x4, offset = 0, fixed_abs, tag = 'sflag constant byte address 0x0 - dummy sync flag']
  #allocation19 [shape = 's32[]', space=sflag, size = 0x4, offset = 0, fixed_abs, tag = 'sflag constant byte address 0x0 - dummy sync flag']
  #allocation20 [shape = 's32[]', space=sflag, size = 0x4, offset = 0, fixed_abs, tag = 'sflag constant byte address 0x0 - dummy sync flag']
  #allocation21 [shape = 's32[]', space=sflag, size = 0x4, offset = 0, fixed_abs, tag = 'sflag constant byte address 0x0 - dummy sync flag']
  #allocation22 [shape = 's32[]', space=sflag, size = 0x4, offset = 0, fixed_abs, tag = 'sflag constant byte address 0x0 - dummy sync flag']
  #allocation23 [shape = 's32[]', space=sflag, size = 0x4, offset = 0, fixed_abs, tag = 'sflag constant byte address 0x0 - dummy sync flag']
  #allocation24 [shape = 's32[]', space=sflag, size = 0x4, offset = 0, fixed_abs, tag = 'sflag constant byte address 0x0 - dummy sync flag']
  #allocation25 [shape = 's32[]', space=sflag, size = 0x4, offset = 0, fixed_abs, tag = 'sflag constant byte address 0x0 - dummy sync flag']
  #allocation26 [shape = 's32[]', space=sflag, size = 0x4, offset = 0, fixed_abs, tag = 'sflag constant byte address 0x0 - dummy sync flag']
  %s0 = inlined_call_operand.hbm [shape: s32[64], index: 0, kind: input, shape index: {}]
  %s1 = inlined_call_operand.vmem [shape: s32[64], index: 1, kind: input, shape index: {}]
  %s2 = inlined_call_operand.vmem [shape: s32[64], index: 2, kind: input, shape index: {}]
  %s3 = inlined_call_operand.hbm [shape: f32[64,128], index: 3, kind: input, shape index: {}]
  %s4 = inlined_call_operand.hbm [shape: f32[64,128], index: 4, kind: input, shape index: {}]
  %s5 = inlined_call_operand.hbm [shape: f32[16,128], index: 5, kind: output, shape index: {}]
  %s6 = sld [smem:[#allocation0]]
  $region82: #{tpu_custom_call.1} parent=0
    _
  %s8 = ssub.s32 1, %s6
  %s9 = scalar_select 0, %s8, %s6
  %11 = dma.hbm_to_smem %s0, 16, [#allocation8], [#allocation7]
  %s12 = sshll.u32 %s1, 4
  %s13 = int_to_ptr.vmem [resolvable:$true] %s12
  %15 = dma.vmem_to_smem %s13, 16, [#allocation9], [#allocation7]
  %s16 = sshll.u32 %s2, 4
  %s17 = int_to_ptr.vmem [resolvable:$true] %s16
  %19 = dma.vmem_to_smem %s17, 16, [#allocation10], [#allocation7]
  %20 = dma.done [#allocation7], 48
  %21 = sfence
  $region1: #{tpu_custom_call.1} parent=0
    #allocation11 [shape = 'u8[8192]{0}', space=vmem, size = 0x2000, scoped, tag = 'output window, operand 0']
    #allocation12 [shape = 's32[2]{0}', space=sflag, size = 0x8, scoped, tag = 'scoped memory for tpu_custom_call.1']
    %22 = vsyncpa [#allocation12], 0
    %s23 = scalar_lea.sflag [#allocation12], 1
    %24 = vsyncpa %s23, 0
    loop: start=0, step=1, limit=5
    $region2: #{tpu_custom_call.1} parent=1 // loop_pre_header
      _
    $region3: #{tpu_custom_call.1} parent=1 // loop_header
      %s26 = sphi 0, %s30
      %p27 = scmp.ge.s32.totalorder %s26, 5
      %s32 = sphi 0, %s42
      %s33 = sphi 0, %s38
      %s34 = sphi 0, %s32
      %s35 = sphi 0, %s33
      %s45 = sphi 0, %s47
      %s48 = sphi 0, %s45
      %s58 = sphi 0, %s48
    $region4: #{tpu_custom_call.1} parent=1 // loop_header_branch
      %29 = sbr.rel (%p27) target = $region8
    $region5: #{tpu_custom_call.1} parent=1 // loop_body
      %s31 = ssub.s32 %s26, 1
      %s36 = sadd.s32 1, %s33
      %p37 = scmp.ge.s32.totalorder %s36, 2
      %s38 = scalar_select %p37, 0, %s36
      %s39 = sadd.s32 1, %s32
      %s40 = scalar_select %p37, %s39, %s32
      %p41 = scmp.ge.s32.totalorder %s40, 2
      %s42 = scalar_select %p41, 0, %s40
      %s43 = ssub.s32 %s32, %s42
      %p44 = scmp.eq.s32.totalorder %s43, 0
      %s46 = sadd.s32 %s45, 1
      %s47 = scalar_select %p44, %s45, %s46
      %p49 = pneg %p44
      %p50 = scmp.eq.s32.totalorder %s26, 3
      %p51 = por %p49, %p50
      %p52 = scmp.ne.s32.totalorder %s45, %s48
      %p53 = scmp.eq.s32.totalorder %s26, 0
      %p54 = por %p52, %p53
      %p55 = scmp.ne.s32.totalorder %s45, %s48
      %p56 = scmp.eq.s32.totalorder %s31, 3
      %p57 = por %p55, %p56
      %p59 = scmp.ne.s32.totalorder %s48, %s58
      %p60 = scmp.eq.s32.totalorder %s31, 0
      %p61 = por %p59, %p60
      %p62 = scmp.lt.s32.totalorder %s26, 4
      // Predicated region
      $region9: #{tpu_custom_call.1} parent=5 // pred_check
        %p63 = pneg %p62
      $region10: #{tpu_custom_call.1} parent=5 // pred_check_branch
        %65 = sbr.rel (%p63) target = $region12
      $region11: #{tpu_custom_call.1} parent=5 // pred_region
        %p66 = pneg %p54
        %p67 = pneg %p51
        %s68 = sand.u32 %s45, 1
        %s69 = scalar_lea.sflag [#allocation12], %s68
        %s70 = sand.u32 %s45, 1
        %s71 = smul.addr %s70, 8
        %s72 = scalar_lea.vmem [#allocation11], %s71
        %p73 = scmp.lt.s32.totalorder %s33, 0
        %s74 = ssub.s32 0, %s33
        %s75 = scalar_select %p73, %s74, %s33
        %s76 = sand.u32 %s75, 1
        %s77 = ssub.s32 0, %s76
        %s78 = scalar_select %p73, %s77, %s76
        %p79 = scmp.eq.s32.totalorder %s33, 0
        // Predicated region
        $region13: #{tpu_custom_call.1} parent=11 // pred_check
          %p80 = pneg %p79
        $region14: #{tpu_custom_call.1} parent=11 // pred_check_branch
          %82 = sbr.rel (%p80) target = $region16
        $region15: #{tpu_custom_call.1} parent=11 // pred_region
          %vm83 = vcmask 7168
          %84 = vst.msk [vmem:[#allocation5] sm:$0xff] %vm83, 0.0
          %85 = vst.msk [vmem:[#allocation5 + $0x8] sm:$0xff] %vm83, 0.0
          %s86 = smul.u32 %s32, 32
          loop: start=0, step=1, limit=16
          $region17: #{tpu_custom_call.1} parent=15 // loop_pre_header
            _
          $region18: #{tpu_custom_call.1} parent=15 // loop_header
            %s88 = sphi 0, %s92
            %p89 = scmp.ge.s32.totalorder %s88, 16
          $region19: #{tpu_custom_call.1} parent=15 // loop_header_branch
            %91 = sbr.rel (%p89) target = $region23
          $region20: #{tpu_custom_call.1} parent=15 // loop_body
            %s93 = sadd.s32 %s86, %s88
            %s94 = sld [smem:[#allocation8 + %s93]]
            %s95 = smul.addr %s94, 16
            %s96 = scalar_lea.hbm %s3, %s95
            %s97 = scalar_lea.vmem [#allocation2], %s88
            // Predicated region
            $region24: #{tpu_custom_call.1} parent=20 // pred_check
              _
            $region25: #{tpu_custom_call.1} parent=20 // pred_check_branch
              %99 = sbr.rel target = $region27
            $region26: #{tpu_custom_call.1} parent=20 // pred_region
              %100 = sst [smem:[#allocation15]] [#allocation14]
              %101 = sst [smem:[#allocation16]] [#allocation13]
            $region27: #{tpu_custom_call.1} parent=20 // pred_fallthru
              _
            %103 = shalt.err (0)
            %s105 = sshll.u32 %s97, 4
            %s106 = int_to_ptr.vmem [resolvable:$true] %s105
            %108 = dma.hbm_to_vmem [thread:$0]  %s96, 16, %s106, [#allocation6]
            %s109 = sld [smem:[#allocation9 + %s93]]
            %s110 = smul.addr %s109, 16
            %s111 = scalar_lea.hbm %s4, %s110
            %s112 = scalar_lea.vmem [#allocation3], %s88
            %s113 = scalar_lea.sflag [#allocation6], 1
            // Predicated region
            $region28: #{tpu_custom_call.1} parent=20 // pred_check
              _
            $region29: #{tpu_custom_call.1} parent=20 // pred_check_branch
              %115 = sbr.rel target = $region31
            $region30: #{tpu_custom_call.1} parent=20 // pred_region
              %116 = sst [smem:[#allocation15]] [#allocation18]
              %117 = sst [smem:[#allocation16]] [#allocation17]
            $region31: #{tpu_custom_call.1} parent=20 // pred_fallthru
              _
            %119 = shalt.err (0)
            %s121 = sshll.u32 %s112, 4
            %s122 = int_to_ptr.vmem [resolvable:$true] %s121
            %124 = dma.hbm_to_vmem [thread:$0]  %s111, 16, %s122, %s113
            %s125 = sld [smem:[#allocation10 + %s93]]
            %s126 = smul.addr %s125, 16
            %s127 = scalar_lea.hbm %s4, %s126
            %s128 = scalar_lea.vmem [#allocation4], %s88
            %s129 = scalar_lea.sflag [#allocation6], 2
            // Predicated region
            $region32: #{tpu_custom_call.1} parent=20 // pred_check
              _
            $region33: #{tpu_custom_call.1} parent=20 // pred_check_branch
              %131 = sbr.rel target = $region35
            $region34: #{tpu_custom_call.1} parent=20 // pred_region
              %132 = sst [smem:[#allocation15]] [#allocation20]
              %133 = sst [smem:[#allocation16]] [#allocation19]
            $region35: #{tpu_custom_call.1} parent=20 // pred_fallthru
              _
            %135 = shalt.err (0)
            %s137 = sshll.u32 %s128, 4
            %s138 = int_to_ptr.vmem [resolvable:$true] %s137
            %140 = dma.hbm_to_vmem [thread:$0]  %s127, 16, %s138, %s129
          $region21: #{tpu_custom_call.1} parent=15 // loop_footer
            %s92 = sadd.s32 1, %s88
          $region22: #{tpu_custom_call.1} parent=15 // loop_footer_branch
            %87 = sbr.rel target = $region18
          $region23: #{tpu_custom_call.1} parent=15 // loop_exit
            _
        $region16: #{tpu_custom_call.1} parent=11 // pred_fallthru
          _
        %s141 = sadd.s32 %s33, 1
        %p142 = scmp.lt.s32.totalorder %s141, 2
        // Predicated region
        $region36: #{tpu_custom_call.1} parent=11 // pred_check
          %p143 = pneg %p142
        $region37: #{tpu_custom_call.1} parent=11 // pred_check_branch
          %145 = sbr.rel (%p143) target = $region39
        $region38: #{tpu_custom_call.1} parent=11 // pred_region
          %s146 = ssub.s32 1, %s78
          %s147 = smul.u32 %s32, 2
          %s148 = sadd.s32 %s147, %s141
          %s149 = smul.u32 %s148, 16
          loop: start=0, step=1, limit=16
          $region40: #{tpu_custom_call.1} parent=38 // loop_pre_header
            _
          $region41: #{tpu_custom_call.1} parent=38 // loop_header
            %s151 = sphi 0, %s155
            %p152 = scmp.ge.s32.totalorder %s151, 16
          $region42: #{tpu_custom_call.1} parent=38 // loop_header_branch
            %154 = sbr.rel (%p152) target = $region46
          $region43: #{tpu_custom_call.1} parent=38 // loop_body
            %s156 = sadd.s32 %s149, %s151
            %s157 = sld [smem:[#allocation8 + %s156]]
            %s158 = smul.addr %s157, 16
            %s159 = scalar_lea.hbm %s3, %s158
            %s160 = smul.u32 %s146, 16
            %s161 = sadd.s32 %s151, %s160
            %s162 = scalar_lea.vmem [#allocation2], %s161
            %s163 = smul.u32 %s146, 3
            %s164 = scalar_lea.sflag [#allocation6], %s163
            // Predicated region
            $region47: #{tpu_custom_call.1} parent=43 // pred_check
              _
            $region48: #{tpu_custom_call.1} parent=43 // pred_check_branch
              %166 = sbr.rel target = $region50
            $region49: #{tpu_custom_call.1} parent=43 // pred_region
              %167 = sst [smem:[#allocation15]] [#allocation22]
              %168 = sst [smem:[#allocation16]] [#allocation21]
            $region50: #{tpu_custom_call.1} parent=43 // pred_fallthru
              _
            %170 = shalt.err (0)
            %s172 = sshll.u32 %s162, 4
            %s173 = int_to_ptr.vmem [resolvable:$true] %s172
            %175 = dma.hbm_to_vmem [thread:$0]  %s159, 16, %s173, %s164
            %s176 = sld [smem:[#allocation9 + %s156]]
            %s177 = smul.addr %s176, 16
            %s178 = scalar_lea.hbm %s4, %s177
            %s179 = scalar_lea.vmem [#allocation3], %s161
            %s180 = sadd.s32 1, %s163
            %s181 = scalar_lea.sflag [#allocation6], %s180
            // Predicated region
            $region51: #{tpu_custom_call.1} parent=43 // pred_check
              _
            $region52: #{tpu_custom_call.1} parent=43 // pred_check_branch
              %183 = sbr.rel target = $region54
            $region53: #{tpu_custom_call.1} parent=43 // pred_region
              %184 = sst [smem:[#allocation15]] [#allocation24]
              %185 = sst [smem:[#allocation16]] [#allocation23]
            $region54: #{tpu_custom_call.1} parent=43 // pred_fallthru
              _
            %187 = shalt.err (0)
            %s189 = sshll.u32 %s179, 4
            %s190 = int_to_ptr.vmem [resolvable:$true] %s189
            %192 = dma.hbm_to_vmem [thread:$0]  %s178, 16, %s190, %s181
            %s193 = sld [smem:[#allocation10 + %s156]]
            %s194 = smul.addr %s193, 16
            %s195 = scalar_lea.hbm %s4, %s194
            %s196 = scalar_lea.vmem [#allocation4], %s161
            %s197 = sadd.s32 2, %s163
            %s198 = scalar_lea.sflag [#allocation6], %s197
            // Predicated region
            $region55: #{tpu_custom_call.1} parent=43 // pred_check
              _
            $region56: #{tpu_custom_call.1} parent=43 // pred_check_branch
              %200 = sbr.rel target = $region58
            $region57: #{tpu_custom_call.1} parent=43 // pred_region
              %201 = sst [smem:[#allocation15]] [#allocation26]
              %202 = sst [smem:[#allocation16]] [#allocation25]
            $region58: #{tpu_custom_call.1} parent=43 // pred_fallthru
              _
            %204 = shalt.err (0)
            %s206 = sshll.u32 %s196, 4
            %s207 = int_to_ptr.vmem [resolvable:$true] %s206
            %209 = dma.hbm_to_vmem [thread:$0]  %s195, 16, %s207, %s198
          $region44: #{tpu_custom_call.1} parent=38 // loop_footer
            %s155 = sadd.s32 1, %s151
          $region45: #{tpu_custom_call.1} parent=38 // loop_footer_branch
            %150 = sbr.rel target = $region41
          $region46: #{tpu_custom_call.1} parent=38 // loop_exit
            _
        $region39: #{tpu_custom_call.1} parent=11 // pred_fallthru
          _
        loop: start=0, step=1, limit=16
        $region59: #{tpu_custom_call.1} parent=11 // loop_pre_header
          _
        $region60: #{tpu_custom_call.1} parent=11 // loop_header
          %s211 = sphi 0, %s215
          %p212 = scmp.ge.s32.totalorder %s211, 16
        $region61: #{tpu_custom_call.1} parent=11 // loop_header_branch
          %214 = sbr.rel (%p212) target = $region65
        $region62: #{tpu_custom_call.1} parent=11 // loop_body
          %s216 = smul.u32 %s78, 3
          %s217 = scalar_lea.sflag [#allocation6], %s216
          %s218 = smul.u32 1, 1
          %s219 = sshll.u32 %s218, 4
          %220 = dma.done %s217, %s219
          %s221 = sadd.s32 1, %s216
          %s222 = scalar_lea.sflag [#allocation6], %s221
          %s223 = sshll.u32 %s218, 4
          %224 = dma.done %s222, %s223
          %s225 = sadd.s32 2, %s216
          %s226 = scalar_lea.sflag [#allocation6], %s225
          %s227 = sshll.u32 %s218, 4
          %228 = dma.done %s226, %s227
        $region63: #{tpu_custom_call.1} parent=11 // loop_footer
          %s215 = sadd.s32 1, %s211
        $region64: #{tpu_custom_call.1} parent=11 // loop_footer_branch
          %210 = sbr.rel target = $region60
        $region65: #{tpu_custom_call.1} parent=11 // loop_exit
          _
        %s229 = smul.u32 %s78, 16
        %s230 = scalar_lea.vmem [#allocation2], %s229
        %v231 = vld [vmem:[%s230] sm:$0xff]
        %v232 = vld [vmem:[%s230 + $0x8] sm:$0xff]
        %s233 = scalar_lea.vmem [#allocation3], %s229
        %v234 = vld [vmem:[%s233] sm:$0xff]
        %v235 = vld [vmem:[%s233 + $0x8] sm:$0xff]
        %s236 = scalar_lea.vmem [#allocation4], %s229
        %v237 = vld [vmem:[%s236] sm:$0xff]
        %v238 = vld [vmem:[%s236 + $0x8] sm:$0xff]
        %v239 = vmul.f32 %v231, %v234
        %v240 = vmul.f32 %v232, %v235
        %241 = vadd.xlane.f32.xlu0 %v239
        %v242 = vpop.xlane.xlu0 %241
        %243 = vadd.xlane.f32.xlu0 %v240
        %v244 = vpop.xlane.xlu0 %243
        %v245 = vmul.f32 %v231, %v237
        %v246 = vmul.f32 %v232, %v238
        %247 = vadd.xlane.f32.xlu0 %v245
        %v248 = vpop.xlane.xlu0 %247
        %249 = vadd.xlane.f32.xlu0 %v246
        %v250 = vpop.xlane.xlu0 %249
        %v251 = vmul.f32 %v231, %v231
        %v252 = vmul.f32 %v232, %v232
        %253 = vadd.xlane.f32.xlu0 %v251
        %v254 = vpop.xlane.xlu0 %253
        %255 = vadd.xlane.f32.xlu0 %v252
        %v256 = vpop.xlane.xlu0 %255
        %v257 = vmul.f32 %v234, %v234
        %v258 = vmul.f32 %v235, %v235
        %259 = vadd.xlane.f32.xlu0 %v257
        %v260 = vpop.xlane.xlu0 %259
        %261 = vadd.xlane.f32.xlu0 %v258
        %v262 = vpop.xlane.xlu0 %261
        %v263 = vmul.f32 %v237, %v237
        %v264 = vmul.f32 %v238, %v238
        %265 = vadd.xlane.f32.xlu0 %v263
        %v266 = vpop.xlane.xlu0 %265
        %267 = vadd.xlane.f32.xlu0 %v264
        %v268 = vpop.xlane.xlu0 %267
        %v269 = vmul.f32 %v254, %v260
        %v270 = vmul.f32 %v256, %v262
        %v271 = vmax.f32 %v269, 1e-16
        %v272 = vmax.f32 %v270, 1e-16
        %v273 = vrsqrt.pop %v271
        %v274 = vrsqrt.pop %v272
        %v275 = vmul.f32 %v242, %v273
        %v276 = vmul.f32 %v244, %v274
        %v277 = vsub.f32 1.0, %v275
        %v278 = vsub.f32 1.0, %v276
        %v279 = vmul.f32 %v254, %v266
        %v280 = vmul.f32 %v256, %v268
        %v281 = vmax.f32 %v279, 1e-16
        %v282 = vmax.f32 %v280, 1e-16
        %v283 = vrsqrt.pop %v281
        %v284 = vrsqrt.pop %v282
        %v285 = vmul.f32 %v248, %v283
        %v286 = vmul.f32 %v250, %v284
        %v287 = vsub.f32 1.0, %v285
        %v288 = vsub.f32 1.0, %v286
        %v289 = vmul.f32 %v277, -1.0
        %v290 = vmul.f32 %v278, -1.0
        %v291 = vsub.f32 0.0, %v289
        %v292 = vsub.f32 0.0, %v290
        %v293 = vmax.f32 %v291, 0.0
        %v294 = vmax.f32 %v292, 0.0
        %v295 = vand.u32 2147483647, %v289
        %v296 = vand.u32 2147483647, %v290
        %v297 = vsub.f32 0.0, %v295
        %v298 = vsub.f32 0.0, %v296
        %v299 = vmul.f32 %v297, 1.442695
        %v300 = vpow.pop %v299
        %v301 = vmul.f32 %v298, 1.442695
        %v302 = vpow.pop %v301
        %v303 = vadd.f32 %v300, 1.0
        %v304 = vadd.f32 %v302, 1.0
        %v305 = vlog2.pop %v303
        %v306 = vmul.f32 %v305, 0.6931472
        %v307 = vlog2.pop %v304
        %v308 = vmul.f32 %v307, 0.6931472
        %v309 = vadd.f32 %v293, %v306
        %v310 = vadd.f32 %v294, %v308
        %v311 = vsub.f32 0.0, %v309
        %v312 = vsub.f32 0.0, %v310
        %v313 = vsub.f32 0.0, %v287
        %v314 = vsub.f32 0.0, %v288
        %v315 = vmax.f32 %v313, 0.0
        %v316 = vmax.f32 %v314, 0.0
        %v317 = vand.u32 2147483647, %v287
        %v318 = vand.u32 2147483647, %v288
        %v319 = vsub.f32 0.0, %v317
        %v320 = vsub.f32 0.0, %v318
        %v321 = vmul.f32 %v319, 1.442695
        %v322 = vpow.pop %v321
        %v323 = vmul.f32 %v320, 1.442695
        %v324 = vpow.pop %v323
        %v325 = vadd.f32 %v322, 1.0
        %v326 = vadd.f32 %v324, 1.0
        %v327 = vlog2.pop %v325
        %v328 = vmul.f32 %v327, 0.6931472
        %v329 = vlog2.pop %v326
        %v330 = vmul.f32 %v329, 0.6931472
        %v331 = vadd.f32 %v315, %v328
        %v332 = vadd.f32 %v316, %v330
        %v333 = vsub.f32 0.0, %v331
        %v334 = vsub.f32 0.0, %v332
        %v335 = vld [vmem:[#allocation5] sm:$0xff]
        %v336 = vld [vmem:[#allocation5 + $0x8] sm:$0xff]
        %v337 = vadd.f32 %v311, %v333
        %v338 = vadd.f32 %v312, %v334
        %v339 = vadd.f32 %v335, %v337
        %v340 = vadd.f32 %v336, %v338
        %vm341 = vcmask 7168
        %342 = vst.msk [vmem:[#allocation5] sm:$0xff] %vm341, %v339
        %343 = vst.msk [vmem:[#allocation5 + $0x8] sm:$0xff] %vm341, %v340
        %p344 = scmp.eq.s32.totalorder %s33, 1
        // Predicated region
        $region66: #{tpu_custom_call.1} parent=11 // pred_check
          %p345 = pneg %p344
        $region67: #{tpu_custom_call.1} parent=11 // pred_check_branch
          %347 = sbr.rel (%p345) target = $region69
        $region68: #{tpu_custom_call.1} parent=11 // pred_region
          %v348 = vld [vmem:[#allocation5] sm:$0xff]
          %v349 = vld [vmem:[#allocation5 + $0x8] sm:$0xff]
          %v350 = vsel %vm341, %v348, 0.0
          %v351 = vsel %vm341, %v349, 0.0
          %v352 = vadd.f32 %v350, %v351
          %353 = vadd.xlane.f32.xlu0 %v352
          %v354 = vpop.xlane.xlu0 %353
          %v355 = vrot.slane %v354, 4
          %v356 = vadd.f32 %v354, %v355
          %v357 = vrot.slane %v356, 2
          %v358 = vadd.f32 %v356, %v357
          %v359 = vrot.slane %v358, 1
          %v360 = vadd.f32 %v358, %v359
          %s361 = vtos %v360
          %v362 = vstv %s361
          %363 = vst [vmem:[%s72] sm:$0xff] %v362
        $region69: #{tpu_custom_call.1} parent=11 // pred_fallthru
          _
        %s364 = sand.u32 %s45, 1
        %s365 = scalar_lea.sflag [#allocation12], %s364
        %s366 = sand.u32 %s45, 1
        %s367 = smul.addr %s366, 8
        %s368 = scalar_lea.vmem [#allocation11], %s367
        // Predicated region
        $region70: #{tpu_custom_call.1} parent=11 // pred_check
          %p369 = pneg %p51
        $region71: #{tpu_custom_call.1} parent=11 // pred_check_branch
          %371 = sbr.rel (%p369) target = $region73
        $region72: #{tpu_custom_call.1} parent=11 // pred_region
          %s373 = ssub.s32 128, 128
          %374 = vsyncadd %s365, %s373
          %s375 = smul.addr %s32, 128
          %s376 = scalar_lea.hbm %s5, %s375
          %s378 = sshll.u32 %s368, 4
          %s379 = int_to_ptr.vmem [resolvable:$true] %s378
          %381 = dma.vmem_to_hbm [thread:$0]  %s379, 128, %s376, %s365
        $region73: #{tpu_custom_call.1} parent=11 // pred_fallthru
          _
      $region12: #{tpu_custom_call.1} parent=5 // pred_fallthru
        _
      %p382 = scmp.le.s32.totalorder 1, %s26
      // Predicated region
      $region74: #{tpu_custom_call.1} parent=5 // pred_check
        %p383 = pneg %p382
      $region75: #{tpu_custom_call.1} parent=5 // pred_check_branch
        %385 = sbr.rel (%p383) target = $region77
      $region76: #{tpu_custom_call.1} parent=5 // pred_region
        %s386 = ssub.s32 %s26, 1
        // Predicated region
        $region78: #{tpu_custom_call.1} parent=76 // pred_check
          %p387 = pneg %p57
        $region79: #{tpu_custom_call.1} parent=76 // pred_check_branch
          %389 = sbr.rel (%p387) target = $region81
        $region80: #{tpu_custom_call.1} parent=76 // pred_region
          %s390 = sand.u32 %s48, 1
          %s391 = scalar_lea.sflag [#allocation12], %s390
          %s392 = sand.u32 %s48, 1
          %s393 = smul.addr %s392, 8
          %s394 = scalar_lea.vmem [#allocation11], %s393
          %395 = dma.done %s391, 128
        $region81: #{tpu_custom_call.1} parent=76 // pred_fallthru
          _
      $region77: #{tpu_custom_call.1} parent=5 // pred_fallthru
        _
    $region6: #{tpu_custom_call.1} parent=1 // loop_footer
      %s30 = sadd.s32 1, %s26
    $region7: #{tpu_custom_call.1} parent=1 // loop_footer_branch
      %25 = sbr.rel target = $region3
    $region8: #{tpu_custom_call.1} parent=1 // loop_exit
      _
    %396 = vsyncpa [#allocation12], 1
    %s397 = scalar_lea.sflag [#allocation12], 1
    %398 = vsyncpa %s397, 1
  %399 = vsyncmov [#allocation6]
  %s400 = vpop.sfrf %399
  %p401 = scmp.eq.s32.totalorder %s400, 0
  %p402 = pneg %p401
  %404 = shalt.err (%p402)
  %s405 = scalar_lea.sflag [#allocation6], 1
  %406 = vsyncmov %s405
  %s407 = vpop.sfrf %406
  %p408 = scmp.eq.s32.totalorder %s407, 0
  %p409 = pneg %p408
  %411 = shalt.err (%p409)
  %s412 = scalar_lea.sflag [#allocation6], 2
  %413 = vsyncmov %s412
  %s414 = vpop.sfrf %413
  %p415 = scmp.eq.s32.totalorder %s414, 0
  %p416 = pneg %p415
  %418 = shalt.err (%p416)
  %s419 = scalar_lea.sflag [#allocation6], 3
  %420 = vsyncmov %s419
  %s421 = vpop.sfrf %420
  %p422 = scmp.eq.s32.totalorder %s421, 0
  %p423 = pneg %p422
  %425 = shalt.err (%p423)
  %s426 = scalar_lea.sflag [#allocation6], 4
  %427 = vsyncmov %s426
  %s428 = vpop.sfrf %427
  %p429 = scmp.eq.s32.totalorder %s428, 0
  %p430 = pneg %p429
  %432 = shalt.err (%p430)
  %s433 = scalar_lea.sflag [#allocation6], 5
  %434 = vsyncmov %s433
  %s435 = vpop.sfrf %434
  %p436 = scmp.eq.s32.totalorder %s435, 0
  %p437 = pneg %p436
  %439 = shalt.err (%p437)

</llo_original>
